<compile_context>
chip_gen: v5e
topology: v5e:2x2
jax: 0.10.0
libtpu: 0.0.40
codegen_flags: <defaults>
</compile_context>

<pallas_src>
import jax
import jax.numpy as jnp
from jax import lax
from jax.experimental import pallas as pl
from jax.experimental.pallas import tpu as pltpu


IN_FEATURES = 1024
NUM_CLASSES = 4


def _round_up(x, m):
    return ((x + m - 1) // m) * m


def cls_kernel(x_ref, w_ref, b_ref, o_ref):
    """Linear (x @ W^T + b) + LogSoftmax, computed in the transposed (C, TB) layout.

    x_ref: (TB, K) activations (f32 or bf16)
    w_ref: (C, K)  weight in PyTorch (out, in) layout -> K (contraction) on lanes
    b_ref: (C, 1)  bias (f32)
    o_ref: (C, TB) f32 log-probabilities (rows on lanes => lane-dense epilogue/store)
    """
    # Contract K of both operands: (C, K) . (TB, K) -> (C, TB), f32 accumulation.
    logits_t = lax.dot_general(
        w_ref[...], x_ref[...],
        dimension_numbers=(((1,), (1,)), ((), ())),
        preferred_element_type=jnp.float32,
    )
    logits_t = logits_t + b_ref[...]
    # Numerically-stable log-softmax over the class (sublane) axis, all in f32.
    m = jnp.max(logits_t, axis=0, keepdims=True)
    shifted = logits_t - m
    lse = jnp.log(jnp.sum(jnp.exp(shifted), axis=0, keepdims=True))
    o_ref[...] = (shifted - lse).astype(o_ref.dtype)


def cls_model_forward(feats, weight, bias, *, tile_b=2048):
    """feats: (B, 1024); weight: (C, 1024) PyTorch layout; bias: (1, C)/(C,) -> (B, C) f32."""
    B, K = feats.shape
    C, Kw = weight.shape
    assert K == Kw

    bias_col = jnp.asarray(bias, jnp.float32).reshape(C, 1)

    # Stream x in the dtype it already lives in (no extra cast pass over HBM).
    # The weight is tiny and resident, so matching it to x's dtype is free.
    if feats.dtype == jnp.bfloat16:
        weight = weight.astype(jnp.bfloat16)
    else:
        feats = feats.astype(jnp.float32)
        weight = weight.astype(jnp.float32)

    dsize = jnp.dtype(feats.dtype).itemsize
    cost = pl.CostEstimate(
        flops=2 * B * K * C,
        transcendentals=B * C + B,
        bytes_accessed=B * K * dsize + C * K * dsize + 4 * B * C + 4 * C,
    )

    # Row tile = lane dim of the transposed output, so it must be a multiple of 128
    # (or cover the whole batch in a single, grid-less call).
    tb = _round_up(max(int(tile_b), 128), 128)

    if B <= tb:
        # Whole problem in one tile: no grid (no per-step overhead / index_map plumbing).
        vmem_need = B * K * dsize + C * K * dsize + 4 * C * B + 4 * C
        out_t = pl.pallas_call(
            cls_kernel,
            out_shape=jax.ShapeDtypeStruct((C, B), jnp.float32),
            cost_estimate=cost,
            compiler_params=pltpu.CompilerParams(
                vmem_limit_bytes=min(max(2 * vmem_need, 32 << 20), 48 << 20),
            ),
        )(feats, weight, bias_col)
    else:
        # Keep >= 2 tiles so the "parallel" axis can feed both TensorCores on v7x.
        tb = min(tb, _round_up(pl.cdiv(B, 2), 128))
        num_tiles = pl.cdiv(B, tb)  # ragged last block: OOB reads padded, OOB writes masked
        # Double-buffered x tile + resident weight/bias + output tile, with headroom,
        # capped at 48 MiB (v7x only has 64 MiB physical VMEM per TensorCore).
        vmem_need = 2 * tb * K * dsize + 2 * C * K * dsize + 2 * 4 * C * tb + 4096
        vmem_limit = min(max(int(1.5 * vmem_need), 32 << 20), 48 << 20)
        out_t = pl.pallas_call(
            cls_kernel,
            out_shape=jax.ShapeDtypeStruct((C, B), jnp.float32),
            grid=(num_tiles,),
            in_specs=[
                pl.BlockSpec((tb, K), lambda i: (i, 0)),   # x tile: streamed over rows
                pl.BlockSpec((C, K), lambda i: (0, 0)),    # weight: resident (DMA'd once)
                pl.BlockSpec((C, 1), lambda i: (0, 0)),    # bias: resident
            ],
            out_specs=pl.BlockSpec((C, tb), lambda i: (0, i)),
            cost_estimate=cost,
            compiler_params=pltpu.CompilerParams(
                dimension_semantics=("parallel",),
                vmem_limit_bytes=vmem_limit,
            ),
        )(feats, weight, bias_col)

    # Transpose back to the PyTorch (B, C) layout: only B*C*4 bytes, negligible.
    return out_t.T


def init_params(key, in_features=IN_FEATURES, num_classes=NUM_CLASSES):
    """Deterministic init mimicking nn.Linear's uniform(-1/sqrt(fan_in), 1/sqrt(fan_in)).

    Weight kept in the PyTorch (out_features, in_features) layout.
    """
    kw, kb = jax.random.split(key)
    bound = 1.0 / jnp.sqrt(jnp.float32(in_features))
    weight = jax.random.uniform(
        kw, (num_classes, in_features), jnp.float32, -bound, bound
    )
    bias = jax.random.uniform(kb, (1, num_classes), jnp.float32, -bound, bound)
    return weight, bias


if __name__ == "__main__":
    key = jax.random.PRNGKey(0)
    k_x, k_p = jax.random.split(key)

    weight, bias = init_params(k_p, IN_FEATURES, NUM_CLASSES)

    # Single-tile (no-grid) path at the module's natural small shape.
    B = 8
    feats = jax.random.normal(k_x, (B, IN_FEATURES), jnp.float32)
    out = jax.block_until_ready(cls_model_forward(feats, weight, bias))
    ref = jax.nn.log_softmax(feats @ weight.T + bias, axis=1)
    assert out.shape == (B, NUM_CLASSES)
    assert jnp.allclose(out, ref, atol=1e-5, rtol=1e-5)

    # Tiled, pipelined, "parallel"-grid path with a ragged last block (B % tb != 0).
    B2 = 300
    feats2 = jax.random.normal(jax.random.PRNGKey(1), (B2, IN_FEATURES), jnp.float32)
    out2 = jax.block_until_ready(cls_model_forward(feats2, weight, bias, tile_b=128))
    ref2 = jax.nn.log_softmax(feats2 @ weight.T + bias, axis=1)
    assert out2.shape == (B2, NUM_CLASSES)
    assert jnp.allclose(out2, ref2, atol=1e-5, rtol=1e-5)

    print("KERNEL_OK")
</pallas_src>

<mosaic_0001>
module attributes {stable_mosaic.version = 11 : i64} {
  func.func @cls_kernel(%arg0: memref<8x1024xf32, #tpu.memory_space<vmem>>, %arg1: memref<4x1024xf32, #tpu.memory_space<vmem>>, %arg2: memref<4x1xf32, #tpu.memory_space<vmem>>, %arg3: memref<4x8xf32, #tpu.memory_space<vmem>>) attributes {dimension_semantics = [], scalar_prefetch = 0 : i64, scratch_operands = 0 : i64, tpu.core_type = #tpu.core_type<tc>} {
    %c0 = arith.constant 0 : index
    %c0_0 = arith.constant 0 : index
    %0 = vector.load %arg1[%c0, %c0_0] : memref<4x1024xf32, #tpu.memory_space<vmem>>, vector<4x1024xf32>
    %c0_1 = arith.constant 0 : index
    %c0_2 = arith.constant 0 : index
    %1 = vector.load %arg0[%c0_1, %c0_2] : memref<8x1024xf32, #tpu.memory_space<vmem>>, vector<8x1024xf32>
    %cst = arith.constant dense<0.000000e+00> : vector<4x8xf32>
    %2 = tpu.matmul %0, %1, %cst {dimension_numbers = #tpu.dot_dimension_numbers<[1], [1], [0], [0], [0, 0, 1, 0], [], []>} : vector<4x1024xf32>, vector<8x1024xf32>, vector<4x8xf32> -> vector<4x8xf32>
    %c0_3 = arith.constant 0 : index
    %c0_4 = arith.constant 0 : index
    %3 = vector.load %arg2[%c0_3, %c0_4] : memref<4x1xf32, #tpu.memory_space<vmem>>, vector<4x1xf32>
    %4 = vector.broadcast %3 : vector<4x1xf32> to vector<4x8xf32>
    %5 = arith.addf %2, %4 : vector<4x8xf32>
    %cst_5 = arith.constant dense<0xFF800000> : vector<8xf32>
    %6 = vector.multi_reduction <maximumf>, %5, %cst_5 [0] : vector<4x8xf32> to vector<8xf32>
    %7 = vector.shape_cast %6 : vector<8xf32> to vector<1x8xf32>
    %8 = vector.broadcast %7 : vector<1x8xf32> to vector<4x8xf32>
    %9 = arith.subf %5, %8 : vector<4x8xf32>
    %10 = math.exp %9 : vector<4x8xf32>
    %cst_6 = arith.constant dense<0.000000e+00> : vector<8xf32>
    %11 = vector.multi_reduction <add>, %10, %cst_6 [0] : vector<4x8xf32> to vector<8xf32>
    %12 = vector.shape_cast %11 : vector<8xf32> to vector<1x8xf32>
    %13 = math.log %12 : vector<1x8xf32>
    %14 = vector.broadcast %13 : vector<1x8xf32> to vector<4x8xf32>
    %15 = arith.subf %9, %14 : vector<4x8xf32>
    %c0_7 = arith.constant 0 : index
    %c0_8 = arith.constant 0 : index
    %16 = vector.load %arg3[%c0_7, %c0_8] : memref<4x8xf32, #tpu.memory_space<vmem>>, vector<4x8xf32>
    tpu.vector_store %arg3[%c0_7, %c0_8], %15 {strides = array<i32>} : memref<4x8xf32, #tpu.memory_space<vmem>>, vector<4x8xf32>,
    return
  }
}

</mosaic_0001>

<llo_original>
// kernel: tpu_custom_call.1
$region0: #{tpu_custom_call.1}
  #allocation0 [shape = 'u32[]', space=smem, size = 0x4, offset = 0x4, fixed_abs, tag = 'smem constant byte address 0x4 - core index']
  #allocation1 [shape = 'u32[72,128]{1,0:T(1,128)}', space=vmem, size = 0x9000, scoped, tag = 'internal scratch']
  %s0 = inlined_call_operand.hbm [shape: f32[8,1024], index: 0, kind: input, shape index: {}]
  %s1 = inlined_call_operand.hbm [shape: f32[4,1024], index: 1, kind: input, shape index: {}]
  %s2 = inlined_call_operand.vmem [shape: f32[4,1], index: 2, kind: input, shape index: {}]
  %s3 = inlined_call_operand.hbm [shape: f32[4,8], index: 3, kind: output, shape index: {}]
  %s4 = sld [smem:[#allocation0]]
  $region30: #{tpu_custom_call.1} parent=0
    _
  %s6 = ssub.s32 1, %s4
  %s7 = scalar_select 0, %s6, %s4
  $region1: #{tpu_custom_call.1} parent=0
    #allocation2 [shape = 'u8[32768]{0}', space=vmem, size = 0x8000, scoped, tag = 'input window, operand 0, single buffered']
    #allocation3 [shape = 's32[1]{0}', space=sflag, size = 0x4, scoped, tag = 'scoped memory for tpu_custom_call.1']
    #allocation4 [shape = 's32[1]{0}', space=sflag, size = 0x4, scoped, tag = 'scoped memory for tpu_custom_call.1']
    #allocation5 [shape = 'u8[16384]{0}', space=vmem, size = 0x4000, scoped, tag = 'input window, operand 1, single buffered']
    #allocation6 [shape = 's32[1]{0}', space=sflag, size = 0x4, scoped, tag = 'scoped memory for tpu_custom_call.1']
    #allocation7 [shape = 'u8[2048]{0}', space=vmem, size = 0x800, scoped, tag = 'output window, operand 0, single buffered']
    %8 = vsyncpa [#allocation3], 0
    %9 = vsyncpa [#allocation6], 0
    %10 = vsyncpa [#allocation4], 0
    // Predicated region
    $region2: #{tpu_custom_call.1} parent=1 // pred_check
      _
    $region3: #{tpu_custom_call.1} parent=1 // pred_check_branch
      %12 = sbr.rel (0) target = $region5
    $region4: #{tpu_custom_call.1} parent=1 // pred_region
      %14 = vsyncadd [#allocation3], 0
      %s16 = sshll.u32 %s0, 4
      %s17 = int_to_ptr.hbm [resolvable:$true] %s16
      %s18 = sshll.u32 [#allocation2], 4
      %s19 = int_to_ptr.vmem [resolvable:$true] %s18
      %21 = dma.hbm_to_vmem [thread:$0]  %s17, 1024, %s19, [#allocation3]
    $region5: #{tpu_custom_call.1} parent=1 // pred_fallthru
      _
    // Predicated region
    $region6: #{tpu_custom_call.1} parent=1 // pred_check
      _
    $region7: #{tpu_custom_call.1} parent=1 // pred_check_branch
      %23 = sbr.rel (0) target = $region9
    $region8: #{tpu_custom_call.1} parent=1 // pred_region
      %25 = vsyncadd [#allocation6], 0
      %s27 = sshll.u32 %s1, 4
      %s28 = int_to_ptr.hbm [resolvable:$true] %s27
      %s29 = sshll.u32 [#allocation5], 4
      %s30 = int_to_ptr.vmem [resolvable:$true] %s29
      %32 = dma.hbm_to_vmem [thread:$0]  %s28, 512, %s30, [#allocation6]
    $region9: #{tpu_custom_call.1} parent=1 // pred_fallthru
      _
    // Predicated region
    $region10: #{tpu_custom_call.1} parent=1 // pred_check
      _
    $region11: #{tpu_custom_call.1} parent=1 // pred_check_branch
      %34 = sbr.rel (0) target = $region13
    $region12: #{tpu_custom_call.1} parent=1 // pred_region
      _
    $region13: #{tpu_custom_call.1} parent=1 // pred_fallthru
      _
    // Predicated region
    $region14: #{tpu_custom_call.1} parent=1 // pred_check
      _
    $region15: #{tpu_custom_call.1} parent=1 // pred_check_branch
      %36 = sbr.rel (0) target = $region17
    $region16: #{tpu_custom_call.1} parent=1 // pred_region
      %38 = dma.done [#allocation3], 1024
    $region17: #{tpu_custom_call.1} parent=1 // pred_fallthru
      _
    // Predicated region
    $region18: #{tpu_custom_call.1} parent=1 // pred_check
      _
    $region19: #{tpu_custom_call.1} parent=1 // pred_check_branch
      %40 = sbr.rel (0) target = $region21
    $region20: #{tpu_custom_call.1} parent=1 // pred_region
      %42 = dma.done [#allocation6], 512
    $region21: #{tpu_custom_call.1} parent=1 // pred_fallthru
      _
    %v43 = vld [vmem:[#allocation5] sm:$0xff]
    %v44 = vld [vmem:[#allocation5 + $0x8] sm:$0xff]
    %v45 = vld [vmem:[#allocation5 + $0x10] sm:$0xff]
    %v46 = vld [vmem:[#allocation5 + $0x18] sm:$0xff]
    %v47 = vld [vmem:[#allocation2] sm:$0xff]
    %v48 = vld [vmem:[#allocation2 + $0x8] sm:$0xff]
    %v49 = vld [vmem:[#allocation2 + $0x10] sm:$0xff]
    %v50 = vld [vmem:[#allocation2 + $0x18] sm:$0xff]
    %v51 = vld [vmem:[#allocation2 + $0x20] sm:$0xff]
    %v52 = vld [vmem:[#allocation2 + $0x28] sm:$0xff]
    %v53 = vld [vmem:[#allocation2 + $0x30] sm:$0xff]
    %v54 = vld [vmem:[#allocation2 + $0x38] sm:$0xff]
    %v55 = vld [vmem:[%s2] sm:$0xf]
    %57 = vset.pattern.permute.xlu0 0
    %58 = vperm.xlu0 %57, %v55
    %v59 = vpop.permute.xlu0 %58
    %65 = vst [vmem:[#allocation1] ss:$2 sm:$0xff] %v43
    %s66 = scalar_lea.vmem [#allocation1], 16
    %67 = vst [vmem:[%s66] ss:$2 sm:$0xff] %v44
    %s68 = scalar_lea.vmem [#allocation1], 32
    %69 = vst [vmem:[%s68] ss:$2 sm:$0xff] %v45
    %s70 = scalar_lea.vmem [#allocation1], 48
    %71 = vst [vmem:[%s70] ss:$2 sm:$0xff] %v46
    %v72 = vld.sshfl [vmem:[#allocation1] sm:$0xff pattern:$0x75316420]
    %v73 = vld.sshfl [vmem:[#allocation1 + $0x8] sm:$0xff pattern:$0x75316420]
    %v74 = vld.sshfl [vmem:[#allocation1 + $0x10] sm:$0xff pattern:$0x75316420]
    %v75 = vld.sshfl [vmem:[#allocation1 + $0x18] sm:$0xff pattern:$0x75316420]
    %v76 = vld.sshfl [vmem:[#allocation1 + $0x20] sm:$0xff pattern:$0x75316420]
    %v77 = vld.sshfl [vmem:[#allocation1 + $0x28] sm:$0xff pattern:$0x75316420]
    %v78 = vld.sshfl [vmem:[#allocation1 + $0x30] sm:$0xff pattern:$0x75316420]
    %v79 = vld.sshfl [vmem:[#allocation1 + $0x38] sm:$0xff pattern:$0x75316420]
    %88 = vmatpush.xpose.msra.mxu0 0.0
    %89 = vmatpush.xpose.msra.mxu0 0.0
    %90 = vmatpush.xpose.msra.mxu0 0.0
    %91 = vmatpush.xpose.msra.mxu0 0.0
    %92 = vmatpush.xpose.msra.mxu0 0.0
    %93 = vmatpush.xpose.msra.mxu0 0.0
    %94 = vmatpush.xpose.msra.mxu0 0.0
    %95 = vmatpush.xpose.msra.mxu0 0.0
    %96 = vmatpush.xpose.msra.mxu0 0.0
    %97 = vmatpush.xpose.msra.mxu0 0.0
    %98 = vmatpush.xpose.msra.mxu0 0.0
    %99 = vmatpush.xpose.msra.mxu0 0.0
    %100 = vmatpush.xpose.msra.mxu0 0.0
    %101 = vmatpush.xpose.msra.mxu0 0.0
    %102 = vmatpush.xpose.msra.mxu0 0.0
    %103 = vmatpush.xpose.msra.mxu0 %v47
    %104 = vmatmul.f32.gmra.mxu0 %v72
    %v105 = vpop.f32.mrf.mxu0
    %v106 = vadd.f32 %v59, %v105
    %107 = vdwg.mxu0
    %108 = vmatpush.xpose.msra.mxu0 0.0
    %109 = vmatpush.xpose.msra.mxu0 0.0
    %110 = vmatpush.xpose.msra.mxu0 0.0
    %111 = vmatpush.xpose.msra.mxu0 0.0
    %112 = vmatpush.xpose.msra.mxu0 0.0
    %113 = vmatpush.xpose.msra.mxu0 0.0
    %114 = vmatpush.xpose.msra.mxu0 0.0
    %115 = vmatpush.xpose.msra.mxu0 0.0
    %116 = vmatpush.xpose.msra.mxu0 0.0
    %117 = vmatpush.xpose.msra.mxu0 0.0
    %118 = vmatpush.xpose.msra.mxu0 0.0
    %119 = vmatpush.xpose.msra.mxu0 0.0
    %120 = vmatpush.xpose.msra.mxu0 0.0
    %121 = vmatpush.xpose.msra.mxu0 0.0
    %122 = vmatpush.xpose.msra.mxu0 0.0
    %123 = vmatpush.xpose.msra.mxu0 %v48
    %124 = vmatmul.f32.gmra.mxu0 %v73
    %v125 = vpop.f32.mrf.mxu0
    %v126 = vadd.f32 %v106, %v125
    %127 = vdwg.mxu0
    %128 = vmatpush.xpose.msra.mxu0 0.0
    %129 = vmatpush.xpose.msra.mxu0 0.0
    %130 = vmatpush.xpose.msra.mxu0 0.0
    %131 = vmatpush.xpose.msra.mxu0 0.0
    %132 = vmatpush.xpose.msra.mxu0 0.0
    %133 = vmatpush.xpose.msra.mxu0 0.0
    %134 = vmatpush.xpose.msra.mxu0 0.0
    %135 = vmatpush.xpose.msra.mxu0 0.0
    %136 = vmatpush.xpose.msra.mxu0 0.0
    %137 = vmatpush.xpose.msra.mxu0 0.0
    %138 = vmatpush.xpose.msra.mxu0 0.0
    %139 = vmatpush.xpose.msra.mxu0 0.0
    %140 = vmatpush.xpose.msra.mxu0 0.0
    %141 = vmatpush.xpose.msra.mxu0 0.0
    %142 = vmatpush.xpose.msra.mxu0 0.0
    %143 = vmatpush.xpose.msra.mxu0 %v49
    %144 = vmatmul.f32.gmra.mxu0 %v74
    %v145 = vpop.f32.mrf.mxu0
    %v146 = vadd.f32 %v126, %v145
    %147 = vdwg.mxu0
    %148 = vmatpush.xpose.msra.mxu0 0.0
    %149 = vmatpush.xpose.msra.mxu0 0.0
    %150 = vmatpush.xpose.msra.mxu0 0.0
    %151 = vmatpush.xpose.msra.mxu0 0.0
    %152 = vmatpush.xpose.msra.mxu0 0.0
    %153 = vmatpush.xpose.msra.mxu0 0.0
    %154 = vmatpush.xpose.msra.mxu0 0.0
    %155 = vmatpush.xpose.msra.mxu0 0.0
    %156 = vmatpush.xpose.msra.mxu0 0.0
    %157 = vmatpush.xpose.msra.mxu0 0.0
    %158 = vmatpush.xpose.msra.mxu0 0.0
    %159 = vmatpush.xpose.msra.mxu0 0.0
    %160 = vmatpush.xpose.msra.mxu0 0.0
    %161 = vmatpush.xpose.msra.mxu0 0.0
    %162 = vmatpush.xpose.msra.mxu0 0.0
    %163 = vmatpush.xpose.msra.mxu0 %v50
    %164 = vmatmul.f32.gmra.mxu0 %v75
    %v165 = vpop.f32.mrf.mxu0
    %v166 = vadd.f32 %v146, %v165
    %167 = vdwg.mxu0
    %168 = vmatpush.xpose.msra.mxu0 0.0
    %169 = vmatpush.xpose.msra.mxu0 0.0
    %170 = vmatpush.xpose.msra.mxu0 0.0
    %171 = vmatpush.xpose.msra.mxu0 0.0
    %172 = vmatpush.xpose.msra.mxu0 0.0
    %173 = vmatpush.xpose.msra.mxu0 0.0
    %174 = vmatpush.xpose.msra.mxu0 0.0
    %175 = vmatpush.xpose.msra.mxu0 0.0
    %176 = vmatpush.xpose.msra.mxu0 0.0
    %177 = vmatpush.xpose.msra.mxu0 0.0
    %178 = vmatpush.xpose.msra.mxu0 0.0
    %179 = vmatpush.xpose.msra.mxu0 0.0
    %180 = vmatpush.xpose.msra.mxu0 0.0
    %181 = vmatpush.xpose.msra.mxu0 0.0
    %182 = vmatpush.xpose.msra.mxu0 0.0
    %183 = vmatpush.xpose.msra.mxu0 %v51
    %184 = vmatmul.f32.gmra.mxu0 %v76
    %v185 = vpop.f32.mrf.mxu0
    %v186 = vadd.f32 %v166, %v185
    %187 = vdwg.mxu0
    %188 = vmatpush.xpose.msra.mxu0 0.0
    %189 = vmatpush.xpose.msra.mxu0 0.0
    %190 = vmatpush.xpose.msra.mxu0 0.0
    %191 = vmatpush.xpose.msra.mxu0 0.0
    %192 = vmatpush.xpose.msra.mxu0 0.0
    %193 = vmatpush.xpose.msra.mxu0 0.0
    %194 = vmatpush.xpose.msra.mxu0 0.0
    %195 = vmatpush.xpose.msra.mxu0 0.0
    %196 = vmatpush.xpose.msra.mxu0 0.0
    %197 = vmatpush.xpose.msra.mxu0 0.0
    %198 = vmatpush.xpose.msra.mxu0 0.0
    %199 = vmatpush.xpose.msra.mxu0 0.0
    %200 = vmatpush.xpose.msra.mxu0 0.0
    %201 = vmatpush.xpose.msra.mxu0 0.0
    %202 = vmatpush.xpose.msra.mxu0 0.0
    %203 = vmatpush.xpose.msra.mxu0 %v52
    %204 = vmatmul.f32.gmra.mxu0 %v77
    %v205 = vpop.f32.mrf.mxu0
    %v206 = vadd.f32 %v186, %v205
    %207 = vdwg.mxu0
    %208 = vmatpush.xpose.msra.mxu0 0.0
    %209 = vmatpush.xpose.msra.mxu0 0.0
    %210 = vmatpush.xpose.msra.mxu0 0.0
    %211 = vmatpush.xpose.msra.mxu0 0.0
    %212 = vmatpush.xpose.msra.mxu0 0.0
    %213 = vmatpush.xpose.msra.mxu0 0.0
    %214 = vmatpush.xpose.msra.mxu0 0.0
    %215 = vmatpush.xpose.msra.mxu0 0.0
    %216 = vmatpush.xpose.msra.mxu0 0.0
    %217 = vmatpush.xpose.msra.mxu0 0.0
    %218 = vmatpush.xpose.msra.mxu0 0.0
    %219 = vmatpush.xpose.msra.mxu0 0.0
    %220 = vmatpush.xpose.msra.mxu0 0.0
    %221 = vmatpush.xpose.msra.mxu0 0.0
    %222 = vmatpush.xpose.msra.mxu0 0.0
    %223 = vmatpush.xpose.msra.mxu0 %v53
    %224 = vmatmul.f32.gmra.mxu0 %v78
    %v225 = vpop.f32.mrf.mxu0
    %v226 = vadd.f32 %v206, %v225
    %227 = vdwg.mxu0
    %228 = vmatpush.xpose.msra.mxu0 0.0
    %229 = vmatpush.xpose.msra.mxu0 0.0
    %230 = vmatpush.xpose.msra.mxu0 0.0
    %231 = vmatpush.xpose.msra.mxu0 0.0
    %232 = vmatpush.xpose.msra.mxu0 0.0
    %233 = vmatpush.xpose.msra.mxu0 0.0
    %234 = vmatpush.xpose.msra.mxu0 0.0
    %235 = vmatpush.xpose.msra.mxu0 0.0
    %236 = vmatpush.xpose.msra.mxu0 0.0
    %237 = vmatpush.xpose.msra.mxu0 0.0
    %238 = vmatpush.xpose.msra.mxu0 0.0
    %239 = vmatpush.xpose.msra.mxu0 0.0
    %240 = vmatpush.xpose.msra.mxu0 0.0
    %241 = vmatpush.xpose.msra.mxu0 0.0
    %242 = vmatpush.xpose.msra.mxu0 0.0
    %243 = vmatpush.xpose.msra.mxu0 %v54
    %244 = vmatmul.f32.gmra.mxu0 %v79
    %v245 = vpop.f32.mrf.mxu0
    %v246 = vadd.f32 %v226, %v245
    %247 = vdwg.mxu0
    %vm248 = vcmask 60416
    %v249 = vsel %vm248, %v246, -inf
    %v250 = vrot.slane %v249, 4
    %v251 = vmax.f32 %v249, %v250
    %v252 = vrot.slane %v251, 2
    %v253 = vmax.f32 %v251, %v252
    %v254 = vrot.slane %v253, 1
    %v255 = vmax.f32 %v253, %v254
    %v256 = vsub.f32 %v246, %v255
    %v257 = vmul.f32 %v256, 1.442695
    %v258 = vpow.pop %v257
    %v259 = vsel %vm248, %v258, 0.0
    %v260 = vrot.slane %v259, 4
    %v261 = vadd.f32 %v259, %v260
    %v262 = vrot.slane %v261, 2
    %v263 = vadd.f32 %v261, %v262
    %v264 = vrot.slane %v263, 1
    %v265 = vadd.f32 %v263, %v264
    %v266 = vlog2.pop %v265
    %v267 = vmul.f32 %v266, 0.6931472
    %v268 = vsub.f32 %v256, %v267
    %269 = vst.msk [vmem:[#allocation7] sm:$0xf] %vm248, %v268
    // Predicated region
    $region22: #{tpu_custom_call.1} parent=1 // pred_check
      _
    $region23: #{tpu_custom_call.1} parent=1 // pred_check_branch
      %271 = sbr.rel (0) target = $region25
    $region24: #{tpu_custom_call.1} parent=1 // pred_region
      %273 = vsyncadd [#allocation4], 0
      %s275 = sshll.u32 [#allocation7], 4
      %s276 = int_to_ptr.vmem [resolvable:$true] %s275
      %s277 = sshll.u32 %s3, 4
      %s278 = int_to_ptr.hbm [resolvable:$true] %s277
      %280 = dma.vmem_to_hbm [thread:$0]  %s276, 64, %s278, [#allocation4]
    $region25: #{tpu_custom_call.1} parent=1 // pred_fallthru
      _
    // Predicated region
    $region26: #{tpu_custom_call.1} parent=1 // pred_check
      _
    $region27: #{tpu_custom_call.1} parent=1 // pred_check_branch
      %282 = sbr.rel (0) target = $region29
    $region28: #{tpu_custom_call.1} parent=1 // pred_region
      %284 = dma.done [#allocation4], 64
    $region29: #{tpu_custom_call.1} parent=1 // pred_fallthru
      _
    %285 = vsyncpa [#allocation3], 1
    %286 = vsyncpa [#allocation6], 1
    %287 = vsyncpa [#allocation4], 1

</llo_original>
